<compile_context>
chip_gen: v6e
topology: v6e:2x2x1
jax: 0.10.0
libtpu: 0.0.40
codegen_flags: <defaults>
</compile_context>

<pallas_src>
import functools

import jax
import jax.numpy as jnp
from jax.experimental import pallas as pl
from jax.experimental.pallas import tpu as pltpu


def _ce_label_smooth_kernel(
    x_ref, t_ref, o_ref, acc_ref, *, epsilon, num_classes, batch, tile_rows
):
    # x_ref: (TB, K) logits tile, t_ref: (TB, 1) int32 labels tile,
    # o_ref: (1, 1) f32 loss (SMEM), acc_ref: (1,) f32 running sum (SMEM).
    i = pl.program_id(0)

    @pl.when(i == 0)
    def _init():
        acc_ref[0] = jnp.float32(0.0)

    x = x_ref[...].astype(jnp.float32)           # (TB, K)
    labels = t_ref[...]                          # (TB, 1) int32

    # numerically-stable pieces of log-softmax (no log_probs materialized)
    m = jnp.max(x, axis=1, keepdims=True)
    shifted = x - m                              # (TB, K)
    lse = jnp.log(jnp.sum(jnp.exp(shifted), axis=1, keepdims=True))  # (TB, 1)

    # shifted value at the target class (one-hot gather without the one-hot)
    col = jax.lax.broadcasted_iota(jnp.int32, x.shape, 1)
    shifted_at_t = jnp.sum(
        jnp.where(col == labels, shifted, 0.0), axis=1, keepdims=True
    )                                            # (TB, 1)
    sum_shifted = jnp.sum(shifted, axis=1, keepdims=True)            # (TB, 1)

    # per-row label-smoothed NLL:
    #   (1-eps)*(lse - shifted_t) + (eps/K)*(K*lse - sum_k shifted_k)
    row_loss = (1.0 - epsilon) * (lse - shifted_at_t) + (
        epsilon / num_classes
    ) * (num_classes * lse - sum_shifted)

    # mask rows beyond the true batch size (last partial tile)
    row = i * tile_rows + jax.lax.broadcasted_iota(jnp.int32, row_loss.shape, 0)
    row_loss = jnp.where(row < batch, row_loss, 0.0)

    acc_ref[0] = acc_ref[0] + jnp.sum(row_loss)

    @pl.when(i == pl.num_programs(0) - 1)
    def _finalize():
        o_ref[0, 0] = acc_ref[0] / batch


def _pick_tile_rows(batch, num_classes, itemsize):
    """Batch-tile rows sized from the actual per-core VMEM (generation aware)."""
    try:
        vmem_bytes = int(pltpu.get_tpu_info().vmem_capacity_bytes)
        if vmem_bytes <= 0:
            raise ValueError
    except Exception:
        vmem_bytes = 64 * 1024 * 1024  # v7x floor; safe everywhere
    # The logits tile is double-buffered by the pipeline; keep 2 buffers within
    # half of VMEM so labels/scratch/compiler temporaries have headroom.
    per_buffer_budget = vmem_bytes // 4
    rows = per_buffer_budget // max(1, num_classes * itemsize)
    rows = max(8, min(rows, 2048))
    if rows >= batch:
        return batch, vmem_bytes
    return max(8, (rows // 8) * 8), vmem_bytes


def cross_entropy_label_smooth(inputs, targets, epsilon=0.1):
    """inputs: (B, K) float logits (f32 or bf16); targets: (B,) int ids -> scalar f32 loss."""
    B, K = inputs.shape
    t2 = targets.astype(jnp.int32).reshape(B, 1)

    itemsize = jnp.dtype(inputs.dtype).itemsize
    tile_rows, vmem_bytes = _pick_tile_rows(B, K, itemsize)
    num_tiles = pl.cdiv(B, tile_rows)

    kernel = functools.partial(
        _ce_label_smooth_kernel,
        epsilon=float(epsilon),
        num_classes=K,
        batch=B,
        tile_rows=tile_rows,
    )
    out = pl.pallas_call(
        kernel,
        out_shape=jax.ShapeDtypeStruct((1, 1), jnp.float32),
        grid=(num_tiles,),
        in_specs=[
            pl.BlockSpec((tile_rows, K), lambda i: (i, 0)),
            pl.BlockSpec((tile_rows, 1), lambda i: (i, 0)),
        ],
        out_specs=pl.BlockSpec((1, 1), lambda i: (0, 0), memory_space=pltpu.SMEM),
        scratch_shapes=[pltpu.SMEM((1,), jnp.float32)],
        compiler_params=pltpu.CompilerParams(
            dimension_semantics=("arbitrary",),  # batch axis carries the accumulator
            vmem_limit_bytes=int(vmem_bytes * 3 // 4),
        ),
    )(inputs, t2)
    return out[0, 0]


def _reference(inputs, targets, epsilon=0.1):
    B, K = inputs.shape
    log_probs = jax.nn.log_softmax(inputs.astype(jnp.float32), axis=1)
    onehot = jax.nn.one_hot(targets, K, dtype=jnp.float32)
    smoothed = (1.0 - epsilon) * onehot + epsilon / K
    return jnp.sum(-smoothed * log_probs) / B


if __name__ == "__main__":
    key = jax.random.PRNGKey(0)
    k1, k2 = jax.random.split(key)

    batch, num_classes = 8, 32
    inputs = jax.random.normal(k1, (batch, num_classes), dtype=jnp.float32)
    targets = jax.random.randint(k2, (batch,), 0, num_classes, dtype=jnp.int32)

    loss = cross_entropy_label_smooth(inputs, targets, epsilon=0.1)
    loss = jax.block_until_ready(loss)

    ref = _reference(inputs, targets, epsilon=0.1)
    assert jnp.allclose(loss, ref, atol=1e-5, rtol=1e-5), (loss, ref)
    print("KERNEL_OK")
</pallas_src>

<mosaic_0001>
module attributes {stable_mosaic.version = 11 : i64} {
  func.func @_ce_label_smooth_kernel(%arg0: i32, %arg1: memref<8x32xf32, #tpu.memory_space<vmem>>, %arg2: memref<8x1xi32, #tpu.memory_space<vmem>>, %arg3: memref<1x1xf32, #tpu.memory_space<smem>>, %arg4: memref<1xf32, #tpu.memory_space<smem>>) attributes {dimension_semantics = [#tpu.dimension_semantics<arbitrary>], iteration_bounds = array<i64: 1>, scalar_prefetch = 0 : i64, scratch_operands = 1 : i64, tpu.core_type = #tpu.core_type<tc>, window_params = [{transform_indices = @transform_0, window_bounds = array<i64: 8, 32>}, {transform_indices = @transform_1, window_bounds = array<i64: 8, 1>}, {transform_indices = @transform_2, window_bounds = array<i64: 1, 1>}]} {
    %c0_i32 = arith.constant 0 : i32
    %0 = arith.cmpi eq, %arg0, %c0_i32 : i32
    %1 = arith.extui %0 : i1 to i32
    %c0_i32_0 = arith.constant 0 : i32
    %2 = arith.cmpi ne, %1, %c0_i32_0 : i32
    scf.if %2 {
      %cst_18 = arith.constant 0.000000e+00 : f32
      %c0_19 = arith.constant 0 : index
      %49 = memref.load %arg4[%c0_19] : memref<1xf32, #tpu.memory_space<smem>>
      memref.store %cst_18, %arg4[%c0_19] : memref<1xf32, #tpu.memory_space<smem>>
    } else {
    }
    %c0 = arith.constant 0 : index
    %c0_1 = arith.constant 0 : index
    %3 = vector.load %arg1[%c0, %c0_1] : memref<8x32xf32, #tpu.memory_space<vmem>>, vector<8x32xf32>
    %c0_2 = arith.constant 0 : index
    %c0_3 = arith.constant 0 : index
    %4 = vector.load %arg2[%c0_2, %c0_3] : memref<8x1xi32, #tpu.memory_space<vmem>>, vector<8x1xi32>
    %cst = arith.constant dense<0xFF800000> : vector<8xf32>
    %5 = vector.multi_reduction <maximumf>, %3, %cst [1] : vector<8x32xf32> to vector<8xf32>
    %6 = vector.shape_cast %5 : vector<8xf32> to vector<8x1xf32>
    %7 = vector.broadcast %6 : vector<8x1xf32> to vector<8x32xf32>
    %8 = arith.subf %3, %7 : vector<8x32xf32>
    %9 = math.exp %8 : vector<8x32xf32>
    %cst_4 = arith.constant dense<0.000000e+00> : vector<8xf32>
    %10 = vector.multi_reduction <add>, %9, %cst_4 [1] : vector<8x32xf32> to vector<8xf32>
    %11 = vector.shape_cast %10 : vector<8xf32> to vector<8x1xf32>
    %12 = math.log %11 : vector<8x1xf32>
    %13 = tpu.iota {dimensions = array<i32: 1>} : vector<8x32xi32>
    %14 = vector.broadcast %4 : vector<8x1xi32> to vector<8x32xi32>
    %15 = arith.cmpi eq, %13, %14 : vector<8x32xi32>
    %cst_5 = arith.constant 0.000000e+00 : f32
    %16 = vector.broadcast %cst_5 : f32 to vector<8x32xf32>
    %17 = arith.select %15, %8, %16 : vector<8x32xi1>, vector<8x32xf32>
    %cst_6 = arith.constant dense<0.000000e+00> : vector<8xf32>
    %18 = vector.multi_reduction <add>, %17, %cst_6 [1] : vector<8x32xf32> to vector<8xf32>
    %19 = vector.shape_cast %18 : vector<8xf32> to vector<8x1xf32>
    %cst_7 = arith.constant dense<0.000000e+00> : vector<8xf32>
    %20 = vector.multi_reduction <add>, %8, %cst_7 [1] : vector<8x32xf32> to vector<8xf32>
    %21 = vector.shape_cast %20 : vector<8xf32> to vector<8x1xf32>
    %22 = arith.subf %12, %19 : vector<8x1xf32>
    %cst_8 = arith.constant 0.899999976 : f32
    %23 = vector.broadcast %cst_8 : f32 to vector<8x1xf32>
    %24 = arith.mulf %23, %22 : vector<8x1xf32>
    %cst_9 = arith.constant 3.200000e+01 : f32
    %25 = vector.broadcast %cst_9 : f32 to vector<8x1xf32>
    %26 = arith.mulf %25, %12 : vector<8x1xf32>
    %27 = arith.subf %26, %21 : vector<8x1xf32>
    %cst_10 = arith.constant 3.125000e-03 : f32
    %28 = vector.broadcast %cst_10 : f32 to vector<8x1xf32>
    %29 = arith.mulf %28, %27 : vector<8x1xf32>
    %30 = arith.addf %24, %29 : vector<8x1xf32>
    %c8_i32 = arith.constant 8 : i32
    %31 = arith.muli %arg0, %c8_i32 : i32
    %32 = tpu.iota {dimensions = array<i32: 0>} : vector<8x1xi32>
    %33 = vector.broadcast %31 : i32 to vector<8x1xi32>
    %34 = arith.addi %33, %32 : vector<8x1xi32>
    %c8_i32_11 = arith.constant 8 : i32
    %35 = vector.broadcast %c8_i32_11 : i32 to vector<8x1xi32>
    %36 = arith.cmpi slt, %34, %35 : vector<8x1xi32>
    %cst_12 = arith.constant 0.000000e+00 : f32
    %37 = vector.broadcast %cst_12 : f32 to vector<8x1xf32>
    %38 = arith.select %36, %30, %37 : vector<8x1xi1>, vector<8x1xf32>
    %c0_13 = arith.constant 0 : index
    %39 = memref.load %arg4[%c0_13] : memref<1xf32, #tpu.memory_space<smem>>
    %40 = vector.shape_cast %38 : vector<8x1xf32> to vector<1x8x1xf32>
    %cst_14 = arith.constant dense<0.000000e+00> : vector<1xf32>
    %41 = vector.multi_reduction <add>, %40, %cst_14 [1, 2] : vector<1x8x1xf32> to vector<1xf32>
    %42 = vector.shape_cast %41 : vector<1xf32> to vector<1x1x1xf32>
    %43 = vector.extract %42[0, 0, 0] : f32 from vector<1x1x1xf32>
    %44 = arith.addf %39, %43 : f32
    %c0_15 = arith.constant 0 : index
    %45 = memref.load %arg4[%c0_15] : memref<1xf32, #tpu.memory_space<smem>>
    memref.store %44, %arg4[%c0_15] : memref<1xf32, #tpu.memory_space<smem>>
    %c0_i32_16 = arith.constant 0 : i32
    %46 = arith.cmpi eq, %arg0, %c0_i32_16 : i32
    %47 = arith.extui %46 : i1 to i32
    %c0_i32_17 = arith.constant 0 : i32
    %48 = arith.cmpi ne, %47, %c0_i32_17 : i32
    scf.if %48 {
      %c0_18 = arith.constant 0 : index
      %49 = memref.load %arg4[%c0_18] : memref<1xf32, #tpu.memory_space<smem>>
      %cst_19 = arith.constant 8.000000e+00 : f32
      %50 = arith.divf %49, %cst_19 : f32
      %c0_20 = arith.constant 0 : index
      %c0_21 = arith.constant 0 : index
      %51 = memref.load %arg3[%c0_20, %c0_21] : memref<1x1xf32, #tpu.memory_space<smem>>
      memref.store %50, %arg3[%c0_20, %c0_21] : memref<1x1xf32, #tpu.memory_space<smem>>
    } else {
    }
    return
  }
  func.func @transform_0(%arg0: i32) -> (i32, i32) {
    %c0_i32 = arith.constant 0 : i32
    %c0_i32_0 = arith.constant 0 : i32
    return %arg0, %c0_i32 : i32, i32
  }
  func.func @transform_1(%arg0: i32) -> (i32, i32) {
    %c0_i32 = arith.constant 0 : i32
    %c0_i32_0 = arith.constant 0 : i32
    return %arg0, %c0_i32 : i32, i32
  }
  func.func @transform_2(%arg0: i32) -> (i32, i32) {
    %c0_i32 = arith.constant 0 : i32
    %c0_i32_0 = arith.constant 0 : i32
    %c0_i32_1 = arith.constant 0 : i32
    return %c0_i32, %c0_i32_0 : i32, i32
  }
}

</mosaic_0001>

<llo_original>
// kernel: tpu_custom_call.1
$region0: #{tpu_custom_call.1}
  #allocation0 [shape = 'u32[]', space=smem, size = 0x4, offset = 0x4, fixed_abs, tag = 'smem constant byte address 0x4 - core index']
  #allocation1 [shape = 'u32[144,128]{1,0:T(1,128)}', space=vmem, size = 0x12000, scoped, tag = 'internal scratch']
  #allocation2 [shape = 'f32[1]{0:T(128)}', space=smem, size = 0x200, scoped, tag = 'scratch operand']
  %s0 = inlined_call_operand.vmem [shape: f32[8,32], index: 0, kind: input, shape index: {}]
  %s1 = inlined_call_operand.vmem [shape: s32[8,1], index: 1, kind: input, shape index: {}]
  %s2 = inlined_call_operand.hbm [shape: f32[1,1], index: 2, kind: output, shape index: {}]
  %s3 = sld [smem:[#allocation0]]
  $region26: #{tpu_custom_call.1} parent=0
    _
  %s5 = ssub.s32 1, %s3
  %s6 = scalar_select 0, %s5, %s3
  $region1: #{tpu_custom_call.1} parent=0
    #allocation3 [shape = 'u8[512]{0}', space=smem, size = 0x200, scoped, tag = 'output window, operand 0, single buffered']
    #allocation4 [shape = 's32[1]{0}', space=sflag, size = 0x4, scoped, tag = 'scoped memory for tpu_custom_call.1']
    %7 = vsyncpa [#allocation4], 0
    // Predicated region
    $region2: #{tpu_custom_call.1} parent=1 // pred_check
      _
    $region3: #{tpu_custom_call.1} parent=1 // pred_check_branch
      %9 = sbr.rel (0) target = $region5
    $region4: #{tpu_custom_call.1} parent=1 // pred_region
      _
    $region5: #{tpu_custom_call.1} parent=1 // pred_fallthru
      _
    // Predicated region
    $region6: #{tpu_custom_call.1} parent=1 // pred_check
      _
    $region7: #{tpu_custom_call.1} parent=1 // pred_check_branch
      %11 = sbr.rel (0) target = $region9
    $region8: #{tpu_custom_call.1} parent=1 // pred_region
      _
    $region9: #{tpu_custom_call.1} parent=1 // pred_fallthru
      _
    %p12 = scmp.eq.s32.totalorder 0, 0
    // Predicated region
    $region10: #{tpu_custom_call.1} parent=1 // pred_check
      %p13 = pneg %p12
    $region11: #{tpu_custom_call.1} parent=1 // pred_check_branch
      %15 = sbr.rel (%p13) target = $region13
    $region12: #{tpu_custom_call.1} parent=1 // pred_region
      %s16 = scalar_lea.smem [#allocation2], 0
      %17 = sst [smem:[%s16]] 0.0
    $region13: #{tpu_custom_call.1} parent=1 // pred_fallthru
      _
    %v18 = vld [vmem:[%s0] sm:$0xff]
    %v19 = vld [vmem:[%s1] sm:$0xff]
    %vm20 = vcmask 261120
    %v21 = vsel %vm20, %v18, -inf
    %22 = vmax.xlane.f32.xlu0 %v21
    %v23 = vpop.xlane.xlu0 %22
    %v24 = vsub.f32 %v18, %v23
    %v25 = vmul.f32 %v24, 1.442695
    %v26 = vpow.pop %v25
    %v27 = vsel %vm20, %v26, 0.0
    %28 = vadd.xlane.f32.xlu0 %v27
    %v29 = vpop.xlane.xlu0 %28
    %v30 = vlog2.pop %v29
    %v31 = vmul.f32 %v30, 0.6931472
    %v32 = vlaneseq
    %v33 = vand.u32 %v32, 127
    %34 = vset.pattern.permute.xlu0 0
    %35 = vperm.xlu0 %34, %v19
    %v36 = vpop.permute.xlu0 %35
    %vm37 = vcmp.eq.s32.totalorder %v33, %v36
    %v38 = vsel %vm37, %v24, 0.0
    %v39 = vsel %vm20, %v38, 0.0
    %40 = vadd.xlane.f32.xlu0 %v39
    %v41 = vpop.xlane.xlu0 %40
    %v42 = vsel %vm20, %v24, 0.0
    %43 = vadd.xlane.f32.xlu0 %v42
    %v44 = vpop.xlane.xlu0 %43
    %v45 = vsub.f32 %v31, %v41
    %v46 = vmul.f32 %v45, 0.9
    %v47 = vmul.f32 %v31, 32.0
    %v48 = vsub.f32 %v47, %v44
    %v49 = vmul.f32 %v48, 0.003125
    %v50 = vadd.f32 %v46, %v49
    %s51 = smul.u32 0, 8
    %v52 = vlaneseq
    %v53 = vshrl.u32 %v52, 7
    %v54 = vstv %s51
    %v55 = vadd.s32 %v54, %v53
    %vm56 = vcmp.lt.s32.totalorder %v55, 8
    %v57 = vsel %vm56, %v50, 0.0
    %s58 = sld [smem:[#allocation2]]
    %vm59 = vcmask 7168
    %v60 = vsel %vm59, %v57, 0.0
    %61 = vadd.xlane.f32.xlu0 %v60
    %v62 = vpop.xlane.xlu0 %61
    %v63 = vrot.slane %v62, 4
    %v64 = vadd.f32 %v62, %v63
    %v65 = vrot.slane %v64, 2
    %v66 = vadd.f32 %v64, %v65
    %v67 = vrot.slane %v66, 1
    %v68 = vadd.f32 %v66, %v67
    %s69 = vtos %v68
    %s70 = sadd.f32 %s58, %s69
    %s71 = scalar_lea.smem [#allocation2], 0
    %72 = sst [smem:[%s71]] %s70
    // Predicated region
    $region14: #{tpu_custom_call.1} parent=1 // pred_check
      %p73 = pneg %p12
    $region15: #{tpu_custom_call.1} parent=1 // pred_check_branch
      %75 = sbr.rel (%p73) target = $region17
    $region16: #{tpu_custom_call.1} parent=1 // pred_region
      %s76 = sld [smem:[#allocation2]]
      %v77 = vrcp.pop 8.0
      %s78 = vtos %v77
      %s79 = smul.f32 %s76, %s78
      %s80 = scalar_lea.smem [#allocation3], 0
      %81 = sst [smem:[%s80]] %s79
    $region17: #{tpu_custom_call.1} parent=1 // pred_fallthru
      _
    // Predicated region
    $region18: #{tpu_custom_call.1} parent=1 // pred_check
      _
    $region19: #{tpu_custom_call.1} parent=1 // pred_check_branch
      %83 = sbr.rel (0) target = $region21
    $region20: #{tpu_custom_call.1} parent=1 // pred_region
      %s85 = ssub.s32 16, 16
      %86 = vsyncadd [#allocation4], %s85
      %89 = dma.smem_to_hbm [#allocation3], 16, %s2, [#allocation4]
    $region21: #{tpu_custom_call.1} parent=1 // pred_fallthru
      _
    // Predicated region
    $region22: #{tpu_custom_call.1} parent=1 // pred_check
      _
    $region23: #{tpu_custom_call.1} parent=1 // pred_check_branch
      %91 = sbr.rel (0) target = $region25
    $region24: #{tpu_custom_call.1} parent=1 // pred_region
      %92 = dma.done [#allocation4], 16
    $region25: #{tpu_custom_call.1} parent=1 // pred_fallthru
      _
    %93 = sfence
    %94 = vsyncpa [#allocation4], 1

</llo_original>
